<compile_context>
chip_gen: v7x
topology: tpu7x:2x2x1
jax: 0.10.0
libtpu: 0.0.40
codegen_flags: <defaults>
</compile_context>

<pallas_src>
import functools

import jax
import jax.numpy as jnp
from jax.experimental import pallas as pl
from jax.experimental.pallas import tpu as pltpu


def _highmixer_kernel(x_ref, w_ref, b_ref, rc_ref, o_ref, *,
                      H, W, C, C2, use_mxu):
    HW = H * W
    x = x_ref[0]                      # (C, HW) — one image, channels on sublanes, HW on lanes

    rc = rc_ref[...]                  # (2, HW) int32: [0] = column index w, [1] = row index h
    wi = rc[0:1, :]                   # (1, HW)
    hi = rc[1:2, :]                   # (1, HW)
    not_last_col = wi < (W - 1)       # neighbour p+1 stays inside the same row
    not_first_col = wi > 0            # neighbour p-1 stays inside the same row
    not_last_row = hi < (H - 1)       # neighbour p+W exists
    not_first_row = hi > 0            # neighbour p-W exists

    # ---- separable 3x3 max-pool, stride 1, pad 1 (borders handled by masks) ----
    # W direction: +/-1 along the flattened lane axis; positions that would wrap across a
    # row boundary are masked back to the centre value (equivalent to -inf padding).
    nxt = pltpu.roll(x, HW - 1, 1)            # value from p+1 (right neighbour)
    prv = pltpu.roll(x, 1, 1)                 # value from p-1 (left  neighbour)
    mw = jnp.maximum(x, jnp.where(not_last_col, nxt, x))
    mw = jnp.maximum(mw, jnp.where(not_first_col, prv, x))
    # H direction: +/- one full row = shift by W along the flattened axis.
    dn = pltpu.roll(mw, HW - W, 1)            # value from p+W (row below)
    up = pltpu.roll(mw, W, 1)                 # value from p-W (row above)
    m = jnp.maximum(mw, jnp.where(not_last_row, dn, mw))
    m = jnp.maximum(m, jnp.where(not_first_row, up, mw))

    # ---- 1x1 conv over channels (+ bias), f32 accumulation ----
    if use_mxu:
        # Large C: single MXU matmul, native input dtype in, f32 accumulation out.
        y = jnp.dot(w_ref[...], m, preferred_element_type=jnp.float32)
        y = y + b_ref[...]                                 # (C2, 1) bias, lane-broadcast
    else:
        # Small C: MXU would run at a few % utilization — unrolled VPU MACs instead.
        wv = w_ref[...]                                    # (C2, C)
        y = jnp.broadcast_to(b_ref[...], (C2, HW)).astype(jnp.float32)  # init acc with bias
        for c in range(C):                                 # static unroll, C small
            y = y + wv[:, c:c + 1] * m[c:c + 1, :]         # (C2,1)*(1,HW) broadcast MAC

    # ---- exact erf GELU (torch.nn.GELU default) ----
    y = 0.5 * y * (1.0 + jax.lax.erf(y * 0.7071067811865476))

    o_ref[0] = y.astype(o_ref.dtype)


def highmixer_v3_forward(x_nchw, conv_w, conv_b):
    """x_nchw: (N, C, H, W); conv_w: (2C, C, 1, 1); conv_b: (2C,). Returns (N, 2C, H, W)."""
    N, C, H, W = x_nchw.shape
    C2 = 2 * C
    HW = H * W

    # Contiguous-trailing-dim reshapes only: no transposes, no padding, no extra HBM passes.
    x_flat = x_nchw.reshape(N, C, HW)
    w2d = conv_w.reshape(C2, C)
    b2d = conv_b.reshape(C2, 1)

    # Tiny (2, HW) int32 table of per-position (col, row) indices for the border masks.
    wi = jnp.tile(jnp.arange(W, dtype=jnp.int32), H)
    hi = jnp.repeat(jnp.arange(H, dtype=jnp.int32), W)
    rc = jnp.stack([wi, hi], axis=0)                       # (2, HW)

    use_mxu = C >= 128
    kernel = functools.partial(_highmixer_kernel, H=H, W=W, C=C, C2=C2,
                               use_mxu=use_mxu)

    # Whole-image-per-batch blocks; budget VMEM explicitly (in + out, double buffered).
    itemsize = x_nchw.dtype.itemsize
    blk_bytes = (C + C2) * HW * itemsize
    vmem_limit = int(min(max(4 * blk_bytes + (1 << 20), 32 * 1024 * 1024),
                         64 * 1024 * 1024))

    out_flat = pl.pallas_call(
        kernel,
        out_shape=jax.ShapeDtypeStruct((N, C2, HW), x_nchw.dtype),
        grid_spec=pltpu.PrefetchScalarGridSpec(
            num_scalar_prefetch=0,
            grid=(N,),
            in_specs=[
                pl.BlockSpec((1, C, HW), lambda n: (n, 0, 0)),   # image (lane-dense)
                pl.BlockSpec((C2, C), lambda n: (0, 0)),         # 1x1 conv weight (resident)
                pl.BlockSpec((C2, 1), lambda n: (0, 0)),         # bias (resident)
                pl.BlockSpec((2, HW), lambda n: (0, 0)),         # (col,row) index table
            ],
            out_specs=pl.BlockSpec((1, C2, HW), lambda n: (n, 0, 0)),
        ),
        compiler_params=pltpu.CompilerParams(
            dimension_semantics=("parallel",),
            vmem_limit_bytes=vmem_limit,
        ),
    )(x_flat, w2d, b2d, rc)

    # Free reshape back to NCHW.
    return out_flat.reshape(N, C2, H, W)


def _reference(x_nchw, conv_w, conv_b):
    """Pure-JAX reference (canonical maxpool + 1x1 conv + exact-erf GELU)."""
    m = jax.lax.reduce_window(
        x_nchw, -jnp.inf, jax.lax.max,
        window_dimensions=(1, 1, 3, 3),
        window_strides=(1, 1, 1, 1),
        padding=((0, 0), (0, 0), (1, 1), (1, 1)))
    y = jnp.einsum('nchw,oc->nohw', m, conv_w[:, :, 0, 0]) \
        + conv_b[None, :, None, None]
    return 0.5 * y * (1.0 + jax.lax.erf(y / jnp.sqrt(2.0)))


if __name__ == "__main__":
    key = jax.random.PRNGKey(0)
    k_x, k_w, k_b = jax.random.split(key, 3)

    N, dim, H, W = 2, 4, 16, 16

    x = jax.random.normal(k_x, (N, dim, H, W), dtype=jnp.float32)
    # Conv2d(dim, 2*dim, kernel_size=1) parameters, deterministic init.
    conv_w = jax.random.normal(k_w, (2 * dim, dim, 1, 1), dtype=jnp.float32) * 0.1
    conv_b = jax.random.normal(k_b, (2 * dim,), dtype=jnp.float32) * 0.1

    out = jax.block_until_ready(highmixer_v3_forward(x, conv_w, conv_b))
    ref = _reference(x, conv_w, conv_b)

    assert out.shape == (N, 2 * dim, H, W), out.shape
    max_err = float(jnp.max(jnp.abs(out - ref)))
    assert jnp.allclose(out, ref, atol=1e-5, rtol=1e-5), max_err

    print("KERNEL_OK")
</pallas_src>

<mosaic_0001>
module attributes {stable_mosaic.version = 11 : i64} {
  func.func @_highmixer_kernel(%arg0: i32, %arg1: memref<1x4x256xf32, #tpu.memory_space<vmem>>, %arg2: memref<8x4xf32, #tpu.memory_space<vmem>>, %arg3: memref<8x1xf32, #tpu.memory_space<vmem>>, %arg4: memref<2x256xi32, #tpu.memory_space<vmem>>, %arg5: memref<1x8x256xf32, #tpu.memory_space<vmem>>) attributes {dimension_semantics = [#tpu.dimension_semantics<parallel>], iteration_bounds = array<i64: 2>, scalar_prefetch = 0 : i64, scratch_operands = 0 : i64, tpu.core_type = #tpu.core_type<tc>, window_params = [{transform_indices = @transform_0, window_bounds = array<i64: 1, 4, 256>}, {pipeline_mode = #tpu.pipeline_mode<synchronous>, transform_indices = @transform_1, window_bounds = array<i64: 8, 4>}, {pipeline_mode = #tpu.pipeline_mode<synchronous>, transform_indices = @transform_2, window_bounds = array<i64: 8, 1>}, {pipeline_mode = #tpu.pipeline_mode<synchronous>, transform_indices = @transform_3, window_bounds = array<i64: 2, 256>}, {transform_indices = @transform_4, window_bounds = array<i64: 1, 8, 256>}]} {
    %c0 = arith.constant 0 : index
    %c0_0 = arith.constant 0 : index
    %c0_1 = arith.constant 0 : index
    %0 = vector.load %arg1[%c0, %c0_0, %c0_1] : memref<1x4x256xf32, #tpu.memory_space<vmem>>, vector<1x4x256xf32>
    %1 = vector.shape_cast %0 : vector<1x4x256xf32> to vector<4x256xf32>
    %c0_2 = arith.constant 0 : index
    %c0_3 = arith.constant 0 : index
    %2 = vector.load %arg4[%c0_2, %c0_3] : memref<2x256xi32, #tpu.memory_space<vmem>>, vector<2x256xi32>
    %3 = vector.extract_strided_slice %2 {offsets = [0, 0], sizes = [1, 256], strides = [1, 1]} : vector<2x256xi32> to vector<1x256xi32>
    %4 = vector.extract_strided_slice %2 {offsets = [1, 0], sizes = [1, 256], strides = [1, 1]} : vector<2x256xi32> to vector<1x256xi32>
    %c15_i32 = arith.constant 15 : i32
    %5 = vector.broadcast %c15_i32 : i32 to vector<1x256xi32>
    %6 = arith.cmpi slt, %3, %5 : vector<1x256xi32>
    %c0_i32 = arith.constant 0 : i32
    %7 = vector.broadcast %c0_i32 : i32 to vector<1x256xi32>
    %8 = arith.cmpi sgt, %3, %7 : vector<1x256xi32>
    %c15_i32_4 = arith.constant 15 : i32
    %9 = vector.broadcast %c15_i32_4 : i32 to vector<1x256xi32>
    %10 = arith.cmpi slt, %4, %9 : vector<1x256xi32>
    %c0_i32_5 = arith.constant 0 : i32
    %11 = vector.broadcast %c0_i32_5 : i32 to vector<1x256xi32>
    %12 = arith.cmpi sgt, %4, %11 : vector<1x256xi32>
    %c255_i32 = arith.constant 255 : i32
    %13 = tpu.dynamic_rotate %1 by %c255_i32 dim 1 : vector<4x256xf32>, i32 -> vector<4x256xf32>
    %c1_i32 = arith.constant 1 : i32
    %14 = tpu.dynamic_rotate %1 by %c1_i32 dim 1 : vector<4x256xf32>, i32 -> vector<4x256xf32>
    %15 = vector.shape_cast %6 : vector<1x256xi1> to vector<1x256xi1>
    %16 = vector.broadcast %15 : vector<1x256xi1> to vector<4x256xi1>
    %17 = arith.select %16, %13, %1 : vector<4x256xi1>, vector<4x256xf32>
    %18 = arith.maximumf %1, %17 : vector<4x256xf32>
    %19 = vector.shape_cast %8 : vector<1x256xi1> to vector<1x256xi1>
    %20 = vector.broadcast %19 : vector<1x256xi1> to vector<4x256xi1>
    %21 = arith.select %20, %14, %1 : vector<4x256xi1>, vector<4x256xf32>
    %22 = arith.maximumf %18, %21 : vector<4x256xf32>
    %c240_i32 = arith.constant 240 : i32
    %23 = tpu.dynamic_rotate %22 by %c240_i32 dim 1 : vector<4x256xf32>, i32 -> vector<4x256xf32>
    %c16_i32 = arith.constant 16 : i32
    %24 = tpu.dynamic_rotate %22 by %c16_i32 dim 1 : vector<4x256xf32>, i32 -> vector<4x256xf32>
    %25 = vector.shape_cast %10 : vector<1x256xi1> to vector<1x256xi1>
    %26 = vector.broadcast %25 : vector<1x256xi1> to vector<4x256xi1>
    %27 = arith.select %26, %23, %22 : vector<4x256xi1>, vector<4x256xf32>
    %28 = arith.maximumf %22, %27 : vector<4x256xf32>
    %29 = vector.shape_cast %12 : vector<1x256xi1> to vector<1x256xi1>
    %30 = vector.broadcast %29 : vector<1x256xi1> to vector<4x256xi1>
    %31 = arith.select %30, %24, %22 : vector<4x256xi1>, vector<4x256xf32>
    %32 = arith.maximumf %28, %31 : vector<4x256xf32>
    %c0_6 = arith.constant 0 : index
    %c0_7 = arith.constant 0 : index
    %33 = vector.load %arg2[%c0_6, %c0_7] : memref<8x4xf32, #tpu.memory_space<vmem>>, vector<8x4xf32>
    %c0_8 = arith.constant 0 : index
    %c0_9 = arith.constant 0 : index
    %34 = vector.load %arg3[%c0_8, %c0_9] : memref<8x1xf32, #tpu.memory_space<vmem>>, vector<8x1xf32>
    %35 = vector.shape_cast %34 : vector<8x1xf32> to vector<8x1xf32>
    %36 = vector.broadcast %35 : vector<8x1xf32> to vector<8x256xf32>
    %37 = vector.extract_strided_slice %33 {offsets = [0, 0], sizes = [8, 1], strides = [1, 1]} : vector<8x4xf32> to vector<8x1xf32>
    %38 = vector.extract_strided_slice %32 {offsets = [0, 0], sizes = [1, 256], strides = [1, 1]} : vector<4x256xf32> to vector<1x256xf32>
    %39 = vector.broadcast %37 : vector<8x1xf32> to vector<8x256xf32>
    %40 = vector.broadcast %38 : vector<1x256xf32> to vector<8x256xf32>
    %41 = arith.mulf %39, %40 : vector<8x256xf32>
    %42 = arith.addf %36, %41 : vector<8x256xf32>
    %43 = vector.extract_strided_slice %33 {offsets = [0, 1], sizes = [8, 1], strides = [1, 1]} : vector<8x4xf32> to vector<8x1xf32>
    %44 = vector.extract_strided_slice %32 {offsets = [1, 0], sizes = [1, 256], strides = [1, 1]} : vector<4x256xf32> to vector<1x256xf32>
    %45 = vector.broadcast %43 : vector<8x1xf32> to vector<8x256xf32>
    %46 = vector.broadcast %44 : vector<1x256xf32> to vector<8x256xf32>
    %47 = arith.mulf %45, %46 : vector<8x256xf32>
    %48 = arith.addf %42, %47 : vector<8x256xf32>
    %49 = vector.extract_strided_slice %33 {offsets = [0, 2], sizes = [8, 1], strides = [1, 1]} : vector<8x4xf32> to vector<8x1xf32>
    %50 = vector.extract_strided_slice %32 {offsets = [2, 0], sizes = [1, 256], strides = [1, 1]} : vector<4x256xf32> to vector<1x256xf32>
    %51 = vector.broadcast %49 : vector<8x1xf32> to vector<8x256xf32>
    %52 = vector.broadcast %50 : vector<1x256xf32> to vector<8x256xf32>
    %53 = arith.mulf %51, %52 : vector<8x256xf32>
    %54 = arith.addf %48, %53 : vector<8x256xf32>
    %55 = vector.extract_strided_slice %33 {offsets = [0, 3], sizes = [8, 1], strides = [1, 1]} : vector<8x4xf32> to vector<8x1xf32>
    %56 = vector.extract_strided_slice %32 {offsets = [3, 0], sizes = [1, 256], strides = [1, 1]} : vector<4x256xf32> to vector<1x256xf32>
    %57 = vector.broadcast %55 : vector<8x1xf32> to vector<8x256xf32>
    %58 = vector.broadcast %56 : vector<1x256xf32> to vector<8x256xf32>
    %59 = arith.mulf %57, %58 : vector<8x256xf32>
    %60 = arith.addf %54, %59 : vector<8x256xf32>
    %cst = arith.constant 5.000000e-01 : f32
    %61 = vector.broadcast %cst : f32 to vector<8x256xf32>
    %62 = arith.mulf %61, %60 : vector<8x256xf32>
    %cst_10 = arith.constant 0.707106769 : f32
    %63 = vector.broadcast %cst_10 : f32 to vector<8x256xf32>
    %64 = arith.mulf %60, %63 : vector<8x256xf32>
    %65 = math.erf %64 : vector<8x256xf32>
    %cst_11 = arith.constant 1.000000e+00 : f32
    %66 = vector.broadcast %cst_11 : f32 to vector<8x256xf32>
    %67 = arith.addf %66, %65 : vector<8x256xf32>
    %68 = arith.mulf %62, %67 : vector<8x256xf32>
    %c0_12 = arith.constant 0 : index
    %c0_13 = arith.constant 0 : index
    %c0_14 = arith.constant 0 : index
    %69 = vector.load %arg5[%c0_12, %c0_13, %c0_14] : memref<1x8x256xf32, #tpu.memory_space<vmem>>, vector<1x8x256xf32>
    %70 = vector.shape_cast %69 : vector<1x8x256xf32> to vector<8x256xf32>
    %71 = vector.shape_cast %68 : vector<8x256xf32> to vector<1x8x256xf32>
    tpu.vector_store %arg5[%c0_12, %c0_13, %c0_14], %71 {strides = array<i32>} : memref<1x8x256xf32, #tpu.memory_space<vmem>>, vector<1x8x256xf32>,
    return
  }
  func.func @transform_0(%arg0: i32) -> (i32, i32, i32) {
    %c0_i32 = arith.constant 0 : i32
    %c0_i32_0 = arith.constant 0 : i32
    %c0_i32_1 = arith.constant 0 : i32
    return %arg0, %c0_i32, %c0_i32_0 : i32, i32, i32
  }
  func.func @transform_1(%arg0: i32) -> (i32, i32) {
    %c0_i32 = arith.constant 0 : i32
    %c0_i32_0 = arith.constant 0 : i32
    %c0_i32_1 = arith.constant 0 : i32
    return %c0_i32, %c0_i32_0 : i32, i32
  }
  func.func @transform_2(%arg0: i32) -> (i32, i32) {
    %c0_i32 = arith.constant 0 : i32
    %c0_i32_0 = arith.constant 0 : i32
    %c0_i32_1 = arith.constant 0 : i32
    return %c0_i32, %c0_i32_0 : i32, i32
  }
  func.func @transform_3(%arg0: i32) -> (i32, i32) {
    %c0_i32 = arith.constant 0 : i32
    %c0_i32_0 = arith.constant 0 : i32
    %c0_i32_1 = arith.constant 0 : i32
    return %c0_i32, %c0_i32_0 : i32, i32
  }
  func.func @transform_4(%arg0: i32) -> (i32, i32, i32) {
    %c0_i32 = arith.constant 0 : i32
    %c0_i32_0 = arith.constant 0 : i32
    %c0_i32_1 = arith.constant 0 : i32
    return %arg0, %c0_i32, %c0_i32_0 : i32, i32, i32
  }
}

</mosaic_0001>

<llo_original>
// kernel: tpu_custom_call.1
$region0: #{tpu_custom_call.1}
  #allocation0 [shape = 'u32[]', space=smem, size = 0x4, offset = 0x4, fixed_abs, tag = 'smem constant byte address 0x4 - core index']
  #allocation1 [shape = 'u32[144,128]{1,0:T(1,128)}', space=vmem, size = 0x12000, scoped, tag = 'internal scratch']
  %s0 = inlined_call_operand.vmem [shape: f32[2,4,256], index: 0, kind: input, shape index: {}]
  %s1 = inlined_call_operand.vmem [shape: f32[8,4], index: 1, kind: input, shape index: {}]
  %s2 = inlined_call_operand.vmem [shape: f32[8,1], index: 2, kind: input, shape index: {}]
  %s3 = inlined_call_operand.vmem [shape: s32[2,256], index: 3, kind: input, shape index: {}]
  %s4 = inlined_call_operand.hbm [shape: f32[2,8,256], index: 4, kind: output, shape index: {}]
  %s5 = sld [smem:[#allocation0]]
  $region49: #{tpu_custom_call.1} parent=0
    _
  %s7 = ssub.s32 1, %s5
  %s8 = scalar_select 0, %s7, %s5
  $region1: #{tpu_custom_call.1} parent=0
    #allocation2 [shape = 'u8[16384]{0}', space=vmem, size = 0x4000, scoped, tag = 'output window, operand 0']
    #allocation3 [shape = 's32[2]{0}', space=sflag, size = 0x8, scoped, tag = 'scoped memory for tpu_custom_call.1']
    %9 = vsyncpa [#allocation3], 0
    %s10 = scalar_lea.sflag [#allocation3], 1
    %11 = vsyncpa %s10, 0
    loop: start=0, step=1, limit=4
    $region2: #{tpu_custom_call.1} parent=1 // loop_pre_header
      _
    $region3: #{tpu_custom_call.1} parent=1 // loop_header
      %s13 = sphi 0, %s17
      %p14 = scmp.ge.s32.totalorder %s13, 4
      %s23 = sphi 0, %s25
      %s26 = sphi 0, %s23
      %s27 = sphi 0, %s26
      %s43 = sphi 0, %s27
      %s47 = sphi 0, %s47
      %s49 = sphi 0, %s47
      %s50 = sphi 0, %s49
      %s64 = sphi 0, %s50
      %s68 = sphi 0, %s68
      %s70 = sphi 0, %s68
      %s71 = sphi 0, %s70
      %s85 = sphi 0, %s71
      %s89 = sphi 0, %s89
      %s91 = sphi 0, %s89
      %s92 = sphi 0, %s91
      %s106 = sphi 0, %s92
      %s112 = sphi 0, %s114
      %s115 = sphi 0, %s112
      %s116 = sphi 0, %s115
      %s132 = sphi 0, %s116
    $region4: #{tpu_custom_call.1} parent=1 // loop_header_branch
      %16 = sbr.rel (%p14) target = $region8
    $region5: #{tpu_custom_call.1} parent=1 // loop_body
      %s18 = ssub.s32 %s13, 1
      %s19 = ssub.s32 %s13, 2
      %s20 = sadd.s32 %s13, 1
      %s21 = ssub.s32 %s13, %s20
      %p22 = scmp.eq.s32.totalorder %s21, 0
      %s24 = sadd.s32 %s23, 1
      %s25 = scalar_select %p22, %s23, %s24
      %p28 = pneg %p22
      %p29 = scmp.eq.s32.totalorder %s13, 1
      %p30 = por %p28, %p29
      %p31 = scmp.ne.s32.totalorder %s23, %s26
      %p32 = scmp.eq.s32.totalorder %s13, 0
      %p33 = por %p31, %p32
      %p34 = scmp.ne.s32.totalorder %s23, %s26
      %p35 = scmp.eq.s32.totalorder %s18, 1
      %p36 = por %p34, %p35
      %p37 = scmp.ne.s32.totalorder %s26, %s27
      %p38 = scmp.eq.s32.totalorder %s18, 0
      %p39 = por %p37, %p38
      %p40 = scmp.ne.s32.totalorder %s26, %s27
      %p41 = scmp.eq.s32.totalorder %s19, 1
      %p42 = por %p40, %p41
      %p44 = scmp.ne.s32.totalorder %s27, %s43
      %p45 = scmp.eq.s32.totalorder %s19, 0
      %p46 = por %p44, %p45
      %s48 = sadd.s32 %s47, 1
      %p51 = scmp.eq.s32.totalorder %s13, 1
      %p52 = scmp.ne.s32.totalorder %s47, %s49
      %p53 = scmp.eq.s32.totalorder %s13, 0
      %p54 = por %p52, %p53
      %p55 = scmp.ne.s32.totalorder %s47, %s49
      %p56 = scmp.eq.s32.totalorder %s18, 1
      %p57 = por %p55, %p56
      %p58 = scmp.ne.s32.totalorder %s49, %s50
      %p59 = scmp.eq.s32.totalorder %s18, 0
      %p60 = por %p58, %p59
      %p61 = scmp.ne.s32.totalorder %s49, %s50
      %p62 = scmp.eq.s32.totalorder %s19, 1
      %p63 = por %p61, %p62
      %p65 = scmp.ne.s32.totalorder %s50, %s64
      %p66 = scmp.eq.s32.totalorder %s19, 0
      %p67 = por %p65, %p66
      %s69 = sadd.s32 %s68, 1
      %p72 = scmp.eq.s32.totalorder %s13, 1
      %p73 = scmp.ne.s32.totalorder %s68, %s70
      %p74 = scmp.eq.s32.totalorder %s13, 0
      %p75 = por %p73, %p74
      %p76 = scmp.ne.s32.totalorder %s68, %s70
      %p77 = scmp.eq.s32.totalorder %s18, 1
      %p78 = por %p76, %p77
      %p79 = scmp.ne.s32.totalorder %s70, %s71
      %p80 = scmp.eq.s32.totalorder %s18, 0
      %p81 = por %p79, %p80
      %p82 = scmp.ne.s32.totalorder %s70, %s71
      %p83 = scmp.eq.s32.totalorder %s19, 1
      %p84 = por %p82, %p83
      %p86 = scmp.ne.s32.totalorder %s71, %s85
      %p87 = scmp.eq.s32.totalorder %s19, 0
      %p88 = por %p86, %p87
      %s90 = sadd.s32 %s89, 1
      %p93 = scmp.eq.s32.totalorder %s13, 1
      %p94 = scmp.ne.s32.totalorder %s89, %s91
      %p95 = scmp.eq.s32.totalorder %s13, 0
      %p96 = por %p94, %p95
      %p97 = scmp.ne.s32.totalorder %s89, %s91
      %p98 = scmp.eq.s32.totalorder %s18, 1
      %p99 = por %p97, %p98
      %p100 = scmp.ne.s32.totalorder %s91, %s92
      %p101 = scmp.eq.s32.totalorder %s18, 0
      %p102 = por %p100, %p101
      %p103 = scmp.ne.s32.totalorder %s91, %s92
      %p104 = scmp.eq.s32.totalorder %s19, 1
      %p105 = por %p103, %p104
      %p107 = scmp.ne.s32.totalorder %s92, %s106
      %p108 = scmp.eq.s32.totalorder %s19, 0
      %p109 = por %p107, %p108
      %s110 = ssub.s32 %s13, %s20
      %p111 = scmp.eq.s32.totalorder %s110, 0
      %s113 = sadd.s32 %s112, 1
      %s114 = scalar_select %p111, %s112, %s113
      %p117 = pneg %p111
      %p118 = scmp.eq.s32.totalorder %s13, 1
      %p119 = por %p117, %p118
      %p120 = scmp.ne.s32.totalorder %s112, %s115
      %p121 = scmp.eq.s32.totalorder %s13, 0
      %p122 = por %p120, %p121
      %p123 = scmp.ne.s32.totalorder %s112, %s115
      %p124 = scmp.eq.s32.totalorder %s18, 1
      %p125 = por %p123, %p124
      %p126 = scmp.ne.s32.totalorder %s115, %s116
      %p127 = scmp.eq.s32.totalorder %s18, 0
      %p128 = por %p126, %p127
      %p129 = scmp.ne.s32.totalorder %s115, %s116
      %p130 = scmp.eq.s32.totalorder %s19, 1
      %p131 = por %p129, %p130
      %p133 = scmp.ne.s32.totalorder %s116, %s132
      %p134 = scmp.eq.s32.totalorder %s19, 0
      %p135 = por %p133, %p134
      %p136 = scmp.le.s32.totalorder 1, %s13
      %p137 = scmp.lt.s32.totalorder %s13, 3
      %p138 = pnand %p136, %p137
      %p139 = pneg %p138
      // Predicated region
      $region9: #{tpu_custom_call.1} parent=5 // pred_check
        _
      $region10: #{tpu_custom_call.1} parent=5 // pred_check_branch
        %141 = sbr.rel (%p138) target = $region12
      $region11: #{tpu_custom_call.1} parent=5 // pred_region
        %s142 = ssub.s32 %s13, 1
        // Predicated region
        $region13: #{tpu_custom_call.1} parent=11 // pred_check
          %p143 = pneg %p60
        $region14: #{tpu_custom_call.1} parent=11 // pred_check_branch
          %145 = sbr.rel (%p143) target = $region16
        $region15: #{tpu_custom_call.1} parent=11 // pred_region
          _
        $region16: #{tpu_custom_call.1} parent=11 // pred_fallthru
          _
        // Predicated region
        $region17: #{tpu_custom_call.1} parent=11 // pred_check
          %p146 = pneg %p81
        $region18: #{tpu_custom_call.1} parent=11 // pred_check_branch
          %148 = sbr.rel (%p146) target = $region20
        $region19: #{tpu_custom_call.1} parent=11 // pred_region
          _
        $region20: #{tpu_custom_call.1} parent=11 // pred_fallthru
          _
        // Predicated region
        $region21: #{tpu_custom_call.1} parent=11 // pred_check
          %p149 = pneg %p102
        $region22: #{tpu_custom_call.1} parent=11 // pred_check_branch
          %151 = sbr.rel (%p149) target = $region24
        $region23: #{tpu_custom_call.1} parent=11 // pred_region
          _
        $region24: #{tpu_custom_call.1} parent=11 // pred_fallthru
          _
      $region12: #{tpu_custom_call.1} parent=5 // pred_fallthru
        _
      %p152 = scmp.lt.s32.totalorder %s13, 2
      // Predicated region
      $region25: #{tpu_custom_call.1} parent=5 // pred_check
        %p153 = pneg %p152
      $region26: #{tpu_custom_call.1} parent=5 // pred_check_branch
        %155 = sbr.rel (%p153) target = $region28
      $region27: #{tpu_custom_call.1} parent=5 // pred_region
        // Predicated region
        $region29: #{tpu_custom_call.1} parent=27 // pred_check
          %p156 = pneg %p33
        $region30: #{tpu_custom_call.1} parent=27 // pred_check_branch
          %158 = sbr.rel (%p156) target = $region32
        $region31: #{tpu_custom_call.1} parent=27 // pred_region
          %p159 = scmp.lt.s32.totalorder %s13, 1
          %s160 = scalar_select %p159, %s13, 1
          %s161 = smul.addr %s160, 2
          %s162 = smul.addr %s161, 4
          %s163 = scalar_lea.vmem %s0, %s162
        $region32: #{tpu_custom_call.1} parent=27 // pred_fallthru
          _
      $region28: #{tpu_custom_call.1} parent=5 // pred_fallthru
        _
      %p164 = scmp.le.s32.totalorder 1, %s13
      %p165 = scmp.lt.s32.totalorder %s13, 3
      %p166 = pnand %p164, %p165
      %p167 = pneg %p166
      // Predicated region
      $region33: #{tpu_custom_call.1} parent=5 // pred_check
        _
      $region34: #{tpu_custom_call.1} parent=5 // pred_check_branch
        %169 = sbr.rel (%p166) target = $region36
      $region35: #{tpu_custom_call.1} parent=5 // pred_region
        %s170 = ssub.s32 %s13, 1
        %p171 = scmp.lt.s32.totalorder %s18, 1
        %s172 = scalar_select %p171, %s18, 1
        %s173 = smul.addr %s172, 2
        %s174 = smul.addr %s173, 4
        %s175 = scalar_lea.vmem %s0, %s174
        %p176 = pneg %p39
        %p177 = pneg %p36
        %p178 = pneg %p60
        %p179 = pneg %p57
        %p180 = pneg %p81
        %p181 = pneg %p78
        %p182 = pneg %p102
        %p183 = pneg %p99
        %p184 = pneg %p128
        %p185 = pneg %p125
        %s186 = sand.u32 %s115, 1
        %s187 = scalar_lea.sflag [#allocation3], %s186
        %s188 = sand.u32 %s115, 1
        %s189 = smul.addr %s188, 16
        %s190 = scalar_lea.vmem [#allocation2], %s189
        %p191 = scmp.lt.s32.totalorder %s18, 1
        %s192 = scalar_select %p191, %s18, 1
        %s193 = smul.addr %s192, 2
        %s194 = smul.addr %s193, 4
        %s195 = scalar_lea.vmem %s0, %s194
        %v196 = vld [vmem:[%s195] sm:$0xff]
        %v197 = vld [vmem:[%s3] sm:$0xf]
        %vm198 = vcmp.lt.s32.totalorder %v197, 15
        %vm199 = vcmp.gt.s32.totalorder %v197, 0
        %v201 = vcombine.high %v196, %v196
        %203 = vrot.lane.b32.xlu0 %v196, 127
        %v204 = vpop.permute.xlu0 %203
        %205 = vrot.lane.b32.xlu0 %v201, 127
        %v206 = vpop.permute.xlu0 %205
        %v207 = vlaneseq
        %v208 = vand.u32 %v207, 127
        %vm209 = vcmp.lt.s32.totalorder %v208, 127
        %v210 = vsel %vm209, %v204, %v206
        %v211 = vsel %vm209, %v206, %v204
        %212 = vrot.lane.b32.xlu0 %v196, 1
        %v213 = vpop.permute.xlu0 %212
        %214 = vrot.lane.b32.xlu0 %v201, 1
        %v215 = vpop.permute.xlu0 %214
        %vm216 = vcmp.lt.s32.totalorder %v208, 1
        %v217 = vsel %vm216, %v213, %v215
        %v218 = vsel %vm216, %v215, %v213
        %v219 = vsel %vm198, 1, 0
        %v220 = vlaneseq
        %v221 = vshrl.u32 %v220, 7
        %v222 = vsub.s32 0, %v221
        %v223 = vrot.slane %v219, %v222
        %v224 = vlaneseq
        %v225 = vshrl.u32 %v224, 7
        %v226 = vsub.s32 2, %v225
        %v227 = vrot.slane %v219, %v226
        %v228 = vlaneseq
        %v229 = vshrl.u32 %v228, 7
        %v230 = vsub.s32 0, %v229
        %v231 = vrot.slane %v223, %v230
        %v232 = vlaneseq
        %v233 = vshrl.u32 %v232, 7
        %v234 = vsub.s32 0, %v233
        %v235 = vrot.slane %v227, %v234
        %vm236 = vcmp.eq.s32.totalorder %v231, 1
        %vm237 = vcmp.eq.s32.totalorder %v235, 1
        %v238 = vsel %vm236, %v210, %v196
        %v239 = vsel %vm237, %v211, %v201
        %v242 = vcombine.low %v238, %v239
        %v244 = vmax.f32 %v196, %v242
        %v245 = vsel %vm199, 1, 0
        %v246 = vlaneseq
        %v247 = vshrl.u32 %v246, 7
        %v248 = vsub.s32 0, %v247
        %v249 = vrot.slane %v245, %v248
        %v250 = vlaneseq
        %v251 = vshrl.u32 %v250, 7
        %v252 = vsub.s32 2, %v251
        %v253 = vrot.slane %v245, %v252
        %v254 = vlaneseq
        %v255 = vshrl.u32 %v254, 7
        %v256 = vsub.s32 0, %v255
        %v257 = vrot.slane %v249, %v256
        %v258 = vlaneseq
        %v259 = vshrl.u32 %v258, 7
        %v260 = vsub.s32 0, %v259
        %v261 = vrot.slane %v253, %v260
        %vm262 = vcmp.eq.s32.totalorder %v257, 1
        %vm263 = vcmp.eq.s32.totalorder %v261, 1
        %v264 = vsel %vm262, %v218, %v196
        %v265 = vsel %vm263, %v217, %v201
        %v268 = vcombine.low %v264, %v265
        %v270 = vmax.f32 %v244, %v268
        %v272 = vcombine.high %v270, %v270
        %274 = vrot.lane.b32.xlu0 %v270, 112
        %v275 = vpop.permute.xlu0 %274
        %276 = vrot.lane.b32.xlu0 %v272, 112
        %v277 = vpop.permute.xlu0 %276
        %vm278 = vcmp.lt.s32.totalorder %v208, 112
        %v279 = vsel %vm278, %v275, %v277
        %v280 = vsel %vm278, %v277, %v275
        %281 = vrot.lane.b32.xlu0 %v270, 16
        %v282 = vpop.permute.xlu0 %281
        %283 = vrot.lane.b32.xlu0 %v272, 16
        %v284 = vpop.permute.xlu0 %283
        %vm285 = vcmp.lt.s32.totalorder %v208, 16
        %v286 = vsel %vm285, %v282, %v284
        %v287 = vsel %vm285, %v284, %v282
        %v288 = vlaneseq
        %v289 = vshrl.u32 %v288, 7
        %v290 = vsub.s32 1, %v289
        %v291 = vrot.slane %v219, %v290
        %v292 = vlaneseq
        %v293 = vshrl.u32 %v292, 7
        %v294 = vsub.s32 3, %v293
        %v295 = vrot.slane %v219, %v294
        %v296 = vlaneseq
        %v297 = vshrl.u32 %v296, 7
        %v298 = vsub.s32 1, %v297
        %v299 = vrot.slane %v291, %v298
        %v300 = vlaneseq
        %v301 = vshrl.u32 %v300, 7
        %v302 = vsub.s32 1, %v301
        %v303 = vrot.slane %v295, %v302
        %vm304 = vcmp.eq.s32.totalorder %v299, 1
        %vm305 = vcmp.eq.s32.totalorder %v303, 1
        %v306 = vsel %vm304, %v279, %v270
        %v307 = vsel %vm305, %v280, %v272
        %v310 = vcombine.low %v306, %v307
        %v312 = vmax.f32 %v270, %v310
        %v313 = vlaneseq
        %v314 = vshrl.u32 %v313, 7
        %v315 = vsub.s32 1, %v314
        %v316 = vrot.slane %v245, %v315
        %v317 = vlaneseq
        %v318 = vshrl.u32 %v317, 7
        %v319 = vsub.s32 3, %v318
        %v320 = vrot.slane %v245, %v319
        %v321 = vlaneseq
        %v322 = vshrl.u32 %v321, 7
        %v323 = vsub.s32 1, %v322
        %v324 = vrot.slane %v316, %v323
        %v325 = vlaneseq
        %v326 = vshrl.u32 %v325, 7
        %v327 = vsub.s32 1, %v326
        %v328 = vrot.slane %v320, %v327
        %vm329 = vcmp.eq.s32.totalorder %v324, 1
        %vm330 = vcmp.eq.s32.totalorder %v328, 1
        %v331 = vsel %vm329, %v287, %v270
        %v332 = vsel %vm330, %v286, %v272
        %v335 = vcombine.low %v331, %v332
        %v337 = vmax.f32 %v312, %v335
        %v338 = vld [vmem:[%s1] sm:$0xff]
        %v339 = vld [vmem:[%s2] sm:$0xff]
        %341 = vset.pattern.permute.xlu0 0
        %342 = vperm.xlu0 %341, %v339
        %v343 = vpop.permute.xlu0 %342
        %346 = vset.pattern.permute.xlu0 0
        %347 = vperm.xlu0 %346, %v338
        %v348 = vpop.permute.xlu0 %347
        %v351 = vlaneseq
        %v352 = vshrl.u32 %v351, 7
        %v353 = vsub.s32 0, %v352
        %v354 = vrot.slane %v337, %v353
        %v355 = vlaneseq
        %v356 = vshrl.u32 %v355, 7
        %v357 = vsub.s32 4, %v356
        %v358 = vrot.slane %v337, %v357
        %v361 = vlaneseq
        %v362 = vshrl.u32 %v361, 7
        %v363 = vsub.s32 0, %v362
        %v364 = vrot.slane %v354, %v363
        %v365 = vlaneseq
        %v366 = vshrl.u32 %v365, 7
        %v367 = vsub.s32 0, %v366
        %v368 = vrot.slane %v358, %v367
        %v369 = vmul.f32 %v348, %v364
        %v370 = vmul.f32 %v348, %v368
        %v371 = vadd.f32 %v343, %v369
        %v372 = vadd.f32 %v343, %v370
        %373 = vset.pattern.permute.xlu0 1
        %374 = vperm.xlu0 %373, %v338
        %v375 = vpop.permute.xlu0 %374
        %v377 = vlaneseq
        %v378 = vshrl.u32 %v377, 7
        %v379 = vsub.s32 1, %v378
        %v380 = vrot.slane %v337, %v379
        %v381 = vlaneseq
        %v382 = vshrl.u32 %v381, 7
        %v383 = vsub.s32 5, %v382
        %v384 = vrot.slane %v337, %v383
        %v387 = vlaneseq
        %v388 = vshrl.u32 %v387, 7
        %v389 = vsub.s32 1, %v388
        %v390 = vrot.slane %v380, %v389
        %v391 = vlaneseq
        %v392 = vshrl.u32 %v391, 7
        %v393 = vsub.s32 1, %v392
        %v394 = vrot.slane %v384, %v393
        %v395 = vmul.f32 %v375, %v390
        %v396 = vmul.f32 %v375, %v394
        %v397 = vadd.f32 %v371, %v395
        %v398 = vadd.f32 %v372, %v396
        %399 = vset.pattern.permute.xlu0 2
        %400 = vperm.xlu0 %399, %v338
        %v401 = vpop.permute.xlu0 %400
        %v403 = vlaneseq
        %v404 = vshrl.u32 %v403, 7
        %v405 = vsub.s32 2, %v404
        %v406 = vrot.slane %v337, %v405
        %v407 = vlaneseq
        %v408 = vshrl.u32 %v407, 7
        %v409 = vsub.s32 6, %v408
        %v410 = vrot.slane %v337, %v409
        %v413 = vlaneseq
        %v414 = vshrl.u32 %v413, 7
        %v415 = vsub.s32 2, %v414
        %v416 = vrot.slane %v406, %v415
        %v417 = vlaneseq
        %v418 = vshrl.u32 %v417, 7
        %v419 = vsub.s32 2, %v418
        %v420 = vrot.slane %v410, %v419
        %v421 = vmul.f32 %v401, %v416
        %v422 = vmul.f32 %v401, %v420
        %v423 = vadd.f32 %v397, %v421
        %v424 = vadd.f32 %v398, %v422
        %425 = vset.pattern.permute.xlu0 3
        %426 = vperm.xlu0 %425, %v338
        %v427 = vpop.permute.xlu0 %426
        %v429 = vlaneseq
        %v430 = vshrl.u32 %v429, 7
        %v431 = vsub.s32 3, %v430
        %v432 = vrot.slane %v337, %v431
        %v433 = vlaneseq
        %v434 = vshrl.u32 %v433, 7
        %v435 = vsub.s32 7, %v434
        %v436 = vrot.slane %v337, %v435
        %v439 = vlaneseq
        %v440 = vshrl.u32 %v439, 7
        %v441 = vsub.s32 3, %v440
        %v442 = vrot.slane %v432, %v441
        %v443 = vlaneseq
        %v444 = vshrl.u32 %v443, 7
        %v445 = vsub.s32 3, %v444
        %v446 = vrot.slane %v436, %v445
        %v447 = vmul.f32 %v427, %v442
        %v448 = vmul.f32 %v427, %v446
        %v449 = vadd.f32 %v423, %v447
        %v450 = vadd.f32 %v424, %v448
        %v451 = vmul.f32 %v449, 0.5
        %v452 = vmul.f32 %v450, 0.5
        %v453 = vmul.f32 %v449, 0.70710677
        %v454 = vmul.f32 %v450, 0.70710677
        %v455 = verf.f32.pop %v453
        %v456 = verf.f32.pop %v454
        %v457 = vadd.f32 %v455, 1.0
        %v458 = vadd.f32 %v456, 1.0
        %v459 = vmul.f32 %v451, %v457
        %v460 = vmul.f32 %v452, %v458
        %461 = vst [vmem:[%s190] sm:$0xff] %v459
        %462 = vst [vmem:[%s190 + $0x8] sm:$0xff] %v460
        %s463 = sand.u32 %s115, 1
        %s464 = scalar_lea.sflag [#allocation3], %s463
        %s465 = sand.u32 %s115, 1
        %s466 = smul.addr %s465, 16
        %s467 = scalar_lea.vmem [#allocation2], %s466
        // Predicated region
        $region37: #{tpu_custom_call.1} parent=35 // pred_check
          %p468 = pneg %p125
        $region38: #{tpu_custom_call.1} parent=35 // pred_check_branch
          %470 = sbr.rel (%p468) target = $region40
        $region39: #{tpu_custom_call.1} parent=35 // pred_region
          %s472 = ssub.s32 256, 256
          %473 = vsyncadd %s464, %s472
          %s474 = smul.addr %s18, 2
          %s475 = smul.addr %s474, 128
          %s476 = scalar_lea.hbm %s4, %s475
          %s478 = sshll.u32 %s467, 4
          %s479 = int_to_ptr.vmem [resolvable:$true] %s478
          %481 = dma.vmem_to_hbm [thread:$0]  %s479, 256, %s476, %s464
        $region40: #{tpu_custom_call.1} parent=35 // pred_fallthru
          _
      $region36: #{tpu_custom_call.1} parent=5 // pred_fallthru
        _
      %p482 = scmp.le.s32.totalorder 2, %s13
      // Predicated region
      $region41: #{tpu_custom_call.1} parent=5 // pred_check
        %p483 = pneg %p482
      $region42: #{tpu_custom_call.1} parent=5 // pred_check_branch
        %485 = sbr.rel (%p483) target = $region44
      $region43: #{tpu_custom_call.1} parent=5 // pred_region
        %s486 = ssub.s32 %s13, 2
        // Predicated region
        $region45: #{tpu_custom_call.1} parent=43 // pred_check
          %p487 = pneg %p131
        $region46: #{tpu_custom_call.1} parent=43 // pred_check_branch
          %489 = sbr.rel (%p487) target = $region48
        $region47: #{tpu_custom_call.1} parent=43 // pred_region
          %s490 = sand.u32 %s116, 1
          %s491 = scalar_lea.sflag [#allocation3], %s490
          %s492 = sand.u32 %s116, 1
          %s493 = smul.addr %s492, 16
          %s494 = scalar_lea.vmem [#allocation2], %s493
          %495 = dma.done %s491, 256
        $region48: #{tpu_custom_call.1} parent=43 // pred_fallthru
          _
      $region44: #{tpu_custom_call.1} parent=5 // pred_fallthru
        _
    $region6: #{tpu_custom_call.1} parent=1 // loop_footer
      %s17 = sadd.s32 1, %s13
    $region7: #{tpu_custom_call.1} parent=1 // loop_footer_branch
      %12 = sbr.rel target = $region3
    $region8: #{tpu_custom_call.1} parent=1 // loop_exit
      _
    %496 = vsyncpa [#allocation3], 1
    %s497 = scalar_lea.sflag [#allocation3], 1
    %498 = vsyncpa %s497, 1

</llo_original>
